<compile_context>
chip_gen: v7x
topology: tpu7x:2x2x1
jax: 0.10.0
libtpu: 0.0.40
codegen_flags: <defaults>
</compile_context>

<pallas_src>
import functools

import jax
import jax.numpy as jnp
import numpy as np
from jax import lax
from jax.experimental import pallas as pl
from jax.experimental.pallas import tpu as pltpu

EPS = 1e-5  # PyTorch BatchNorm2d default eps


# ------------------------------ Pallas kernel --------------------------------

def _residual_block_kernel(x_ref, w1_ref, w2s_ref, p_ref, o_ref,
                           im1_ref, im2_ref, *, H, W, margin):
    """Fused pre-activation residual block for one sample, (C, H*W) lane-dense layout.

    x_ref   : (1, Cin, H*W)          raw input, compute dtype (H*W on lanes)
    w1_ref  : (Cmid, 9*Cin)          3x3 conv1 weights, tap-major along K
    w2s_ref : (Cout, 9*Cmid + Cin)   3x3 conv2 weights ++ 1x1 shortcut weights
    p_ref   : (Cmax, 5) f32          packed per-channel params:
                                     col0=s1, col1=t1 (BN1, Cin rows)
                                     col2=s2, col3=t2 (BN2 + conv1 bias, Cout rows)
                                     col4=conv2 bias + shortcut bias (Cout rows)
    o_ref   : (1, Cout, H*W) f32
    im1/im2 : VMEM im2col slabs, lane-extended by `margin` on both sides.
    """
    HW = H * W
    cin = x_ref.shape[1]
    cmid = w1_ref.shape[0]
    cout = o_ref.shape[1]
    cd = x_ref.dtype

    # Zero the im2col slabs ONCE: the interior windows are fully rewritten every grid
    # step and the margins / row-edge tails are never written again (scratch persists
    # across grid iterations), so no per-step full-scratch zeroing is needed.
    @pl.when(pl.program_id(0) == 0)
    def _zero_slabs():
        im1_ref[...] = jnp.zeros(im1_ref.shape, im1_ref.dtype)
        im2_ref[...] = jnp.zeros(im2_ref.shape, im2_ref.dtype)

    # Column index along the flattened H*W lane axis (for the dj edge masks).
    col = lax.broadcasted_iota(jnp.int32, (1, HW), 1) % W

    def scatter_taps(dst_ref, act_f32):
        """Write 9 shifted copies of act (C, HW) into dst's tap-major row blocks.

        Tap (di, dj) needs act[c, i+di-1, j+dj-1] (zero outside the image) at output
        position hw = i*W + j, i.e. act[hw + s] with s = (di-1)*W + (dj-1).  We store
        the column-edge-masked activation, unshifted, at lane offset (margin - s); the
        aligned read window [margin, margin+HW) then holds exactly the shifted map,
        with row-edge zeros supplied by the pre-zeroed margins.
        """
        rows = act_f32.shape[0]
        act_cd = act_f32.astype(cd)
        variants = {
            0: act_cd,                                                    # dj-1 == 0
            1: jnp.where(col > 0, act_cd, jnp.zeros_like(act_cd)),        # dj-1 == +1
            -1: jnp.where(col < W - 1, act_cd, jnp.zeros_like(act_cd)),   # dj-1 == -1
        }
        for tap in range(9):
            dr, dc = tap // 3 - 1, tap % 3 - 1
            off = margin - (dr * W + dc)
            dst_ref[pl.ds(tap * rows, rows), pl.ds(off, HW)] = variants[dc]

    x_raw = x_ref[0]                                              # (Cin, HW), cd

    # ---- BN1 + ReLU (pre-activation); f32 epilogue math ----------------------
    s1 = p_ref[0:cin, 0:1]
    t1 = p_ref[0:cin, 1:2]
    xa = jnp.maximum(x_raw.astype(jnp.float32) * s1 + t1, 0.0)    # (Cin, HW) f32

    # ---- conv1 (3x3, pad=1) as ONE matmul, K = 9*Cin --------------------------
    scatter_taps(im1_ref, xa)
    y1 = jnp.dot(w1_ref[...], im1_ref[pl.ds(0, 9 * cin), pl.ds(margin, HW)],
                 preferred_element_type=jnp.float32)              # (Cmid, HW) f32

    # ---- BN2 + ReLU (conv1 bias already folded into t2) -----------------------
    s2 = p_ref[0:cmid, 2:3]
    t2 = p_ref[0:cmid, 3:4]
    u = jnp.maximum(y1 * s2 + t2, 0.0)                            # (Cmid, HW) f32

    # ---- conv2 (3x3) + 1x1 shortcut fused into ONE matmul, K = 9*Cmid + Cin ---
    scatter_taps(im2_ref, u)
    im2_ref[pl.ds(9 * cmid, cin), pl.ds(margin, HW)] = x_raw      # shortcut "tap"
    out = jnp.dot(w2s_ref[...],
                  im2_ref[pl.ds(0, 9 * cmid + cin), pl.ds(margin, HW)],
                  preferred_element_type=jnp.float32)             # (Cout, HW) f32

    bo = p_ref[0:cout, 4:5]                                       # conv2 + shortcut bias
    o_ref[0] = (out + bo).astype(o_ref.dtype)


# --------------------------------- wrapper -----------------------------------

def _fold_bn(gamma, beta, mean, var):
    s = gamma / jnp.sqrt(var + EPS)
    return s, beta - mean * s


@functools.partial(jax.jit, static_argnames=("stride", "compute_dtype"))
def residual_block_forward(params, x_nchw, *, stride=1, compute_dtype=jnp.bfloat16):
    if stride != 1:
        # TODO(synk): stride>1 (downsampling block) needs output-position subsampling
        # of the tap windows; not implemented in the fused kernel.
        raise NotImplementedError("fused Pallas residual_block supports stride=1 only")

    n, cin, h, w = x_nchw.shape
    hw = h * w
    cout = params["c1_w"].shape[-1]
    cmid = cout
    cmax = max(cin, cout)
    cd = compute_dtype
    margin = ((w + 1 + 127) // 128) * 128        # lane-aligned halo for the tap shifts

    # Fold inference BatchNorms (+ conv1 bias) into per-channel scale/shift and pack
    # all five per-channel vectors into ONE tiny side input.
    s1, t1 = _fold_bn(*params["bn1"])                    # applied to the raw input
    s2, t2r = _fold_bn(*params["bn2"])                   # applied to conv1 output
    t2 = s2 * params["c1_b"] + t2r                       # folds conv1 bias
    bias_out = params["c2_b"] + params["s_b"]            # conv2 bias + shortcut bias
    pk = jnp.zeros((cmax, 5), jnp.float32)
    pk = pk.at[:cin, 0].set(s1).at[:cin, 1].set(t1)
    pk = pk.at[:cout, 2].set(s2).at[:cout, 3].set(t2).at[:cout, 4].set(bias_out)

    # Weights as (Cout, K) matmul operands (tap-major K), pre-cast once.
    w1_mat = params["c1_w"].reshape(9 * cin, cout).T.astype(cd)          # (Cmid, 9*Cin)
    w2_mat = params["c2_w"].reshape(9 * cmid, cout).T                    # (Cout, 9*Cmid)
    w2s_mat = jnp.concatenate([w2_mat, params["s_w"].T], axis=1).astype(cd)

    # NCHW kept end-to-end: (N,C,H,W) -> (N,C,H*W) is a free reshape; H*W rides lanes.
    x_flat = x_nchw.reshape(n, cin, hw).astype(cd)

    kernel = functools.partial(_residual_block_kernel, H=h, W=w, margin=margin)
    out = pl.pallas_call(
        kernel,
        out_shape=jax.ShapeDtypeStruct((n, cout, hw), jnp.float32),
        grid=(n,),
        in_specs=[
            pl.BlockSpec((1, cin, hw), lambda i: (i, 0, 0)),             # x
            pl.BlockSpec((cmid, 9 * cin), lambda i: (0, 0)),             # conv1 weights
            pl.BlockSpec((cout, 9 * cmid + cin), lambda i: (0, 0)),      # conv2 ++ shortcut
            pl.BlockSpec((cmax, 5), lambda i: (0, 0)),                   # packed BN/bias
        ],
        out_specs=pl.BlockSpec((1, cout, hw), lambda i: (i, 0, 0)),
        scratch_shapes=[
            pltpu.VMEM((9 * cin, hw + 2 * margin), cd),                  # conv1 im2col
            pltpu.VMEM((9 * cmid + cin, hw + 2 * margin), cd),           # conv2 + shortcut
        ],
        compiler_params=pltpu.CompilerParams(
            dimension_semantics=("parallel",),
            vmem_limit_bytes=32 * 1024 * 1024),
    )(x_flat, w1_mat, w2s_mat, pk)

    return out.reshape(n, cout, h, w)                                    # NCHW, no transpose


# ---------------------------- reference (pure JAX) ----------------------------

def ref_forward(params, x_nchw, *, stride=1):
    x = jnp.transpose(x_nchw, (0, 2, 3, 1)).astype(jnp.float32)
    hp = lax.Precision.HIGHEST

    def bn(t, g, b, m, v):
        return g * (t - m) / jnp.sqrt(v + EPS) + b

    h1 = jax.nn.relu(bn(x, *params["bn1"]))
    y1 = lax.conv_general_dilated(
        h1, params["c1_w"], (stride, stride), "SAME",
        dimension_numbers=("NHWC", "HWIO", "NHWC"), precision=hp) + params["c1_b"]
    h2 = jax.nn.relu(bn(y1, *params["bn2"]))
    y2 = lax.conv_general_dilated(
        h2, params["c2_w"], (1, 1), "SAME",
        dimension_numbers=("NHWC", "HWIO", "NHWC"), precision=hp) + params["c2_b"]
    sc = jnp.einsum("nhwc,co->nhwo", x[:, ::stride, ::stride, :], params["s_w"],
                    precision=hp) + params["s_b"]
    return jnp.transpose(y2 + sc, (0, 3, 1, 2))


# -------------------------------- param init ----------------------------------

def init_params(key, in_channels, out_channels):
    keys = jax.random.split(key, 14)

    def nrm(k, shape, s=0.1):
        return s * jax.random.normal(k, shape, jnp.float32)

    p = {}
    # bn tuples: (gamma, beta, running_mean, running_var)
    p["bn1"] = (1.0 + nrm(keys[0], (in_channels,)), nrm(keys[1], (in_channels,)),
                nrm(keys[2], (in_channels,)),
                0.5 + jax.random.uniform(keys[3], (in_channels,)))
    p["c1_w"] = nrm(keys[4], (3, 3, in_channels, out_channels))     # HWIO
    p["c1_b"] = nrm(keys[5], (out_channels,))
    p["bn2"] = (1.0 + nrm(keys[6], (out_channels,)), nrm(keys[7], (out_channels,)),
                nrm(keys[8], (out_channels,)),
                0.5 + jax.random.uniform(keys[9], (out_channels,)))
    p["c2_w"] = nrm(keys[10], (3, 3, out_channels, out_channels))   # HWIO
    p["c2_b"] = nrm(keys[11], (out_channels,))
    p["s_w"] = nrm(keys[12], (in_channels, out_channels))           # 1x1 shortcut
    p["s_b"] = nrm(keys[13], (out_channels,))
    return p


# ----------------------------------- main --------------------------------------

if __name__ == "__main__":
    N, IN_C, OUT_C, H, W = 2, 4, 8, 16, 16

    key = jax.random.PRNGKey(0)
    kx, kp = jax.random.split(key)
    x = jax.random.normal(kx, (N, IN_C, H, W), jnp.float32)     # NCHW like PyTorch
    params = init_params(kp, IN_C, OUT_C)

    ref = jax.block_until_ready(ref_forward(params, x, stride=1))

    # f32 compute path: structural check (BN folding, tap/offset layout, residual add).
    out_f32 = jax.block_until_ready(
        residual_block_forward(params, x, stride=1, compute_dtype=jnp.float32))
    np.testing.assert_allclose(np.asarray(out_f32), np.asarray(ref),
                               rtol=1e-2, atol=1e-2)

    # bf16 matmul operands (the performance configuration): looser tolerance.
    out_bf16 = jax.block_until_ready(
        residual_block_forward(params, x, stride=1, compute_dtype=jnp.bfloat16))
    np.testing.assert_allclose(np.asarray(out_bf16), np.asarray(ref),
                               rtol=5e-2, atol=5e-2)

    assert out_bf16.shape == (N, OUT_C, H, W)
    print("KERNEL_OK")
</pallas_src>

<mosaic_0001>
module attributes {stable_mosaic.version = 11 : i64} {
  func.func @_residual_block_kernel(%arg0: i32, %arg1: memref<1x4x256xf32, #tpu.memory_space<vmem>>, %arg2: memref<8x36xf32, #tpu.memory_space<vmem>>, %arg3: memref<8x76xf32, #tpu.memory_space<vmem>>, %arg4: memref<8x5xf32, #tpu.memory_space<vmem>>, %arg5: memref<1x8x256xf32, #tpu.memory_space<vmem>>, %arg6: memref<36x512xf32, #tpu.memory_space<vmem>>, %arg7: memref<76x512xf32, #tpu.memory_space<vmem>>) attributes {dimension_semantics = [#tpu.dimension_semantics<parallel>], iteration_bounds = array<i64: 2>, scalar_prefetch = 0 : i64, scratch_operands = 2 : i64, tpu.core_type = #tpu.core_type<tc>, window_params = [{transform_indices = @transform_0, window_bounds = array<i64: 1, 4, 256>}, {pipeline_mode = #tpu.pipeline_mode<synchronous>, transform_indices = @transform_1, window_bounds = array<i64: 8, 36>}, {pipeline_mode = #tpu.pipeline_mode<synchronous>, transform_indices = @transform_2, window_bounds = array<i64: 8, 76>}, {pipeline_mode = #tpu.pipeline_mode<synchronous>, transform_indices = @transform_3, window_bounds = array<i64: 8, 5>}, {transform_indices = @transform_4, window_bounds = array<i64: 1, 8, 256>}]} {
    %c0_i32 = arith.constant 0 : i32
    %0 = arith.cmpi eq, %arg0, %c0_i32 : i32
    %1 = arith.extui %0 : i1 to i32
    %c0_i32_0 = arith.constant 0 : i32
    %2 = arith.cmpi ne, %1, %c0_i32_0 : i32
    scf.if %2 {
      %cst_51 = arith.constant 0.000000e+00 : f32
      %93 = vector.broadcast %cst_51 : f32 to vector<36x512xf32>
      %c0_52 = arith.constant 0 : index
      %c0_53 = arith.constant 0 : index
      %94 = vector.load %arg6[%c0_52, %c0_53] : memref<36x512xf32, #tpu.memory_space<vmem>>, vector<36x512xf32>
      tpu.vector_store %arg6[%c0_52, %c0_53], %93 {strides = array<i32>} : memref<36x512xf32, #tpu.memory_space<vmem>>, vector<36x512xf32>,
      %cst_54 = arith.constant 0.000000e+00 : f32
      %95 = vector.broadcast %cst_54 : f32 to vector<76x512xf32>
      %c0_55 = arith.constant 0 : index
      %c0_56 = arith.constant 0 : index
      %96 = vector.load %arg7[%c0_55, %c0_56] : memref<76x512xf32, #tpu.memory_space<vmem>>, vector<76x512xf32>
      tpu.vector_store %arg7[%c0_55, %c0_56], %95 {strides = array<i32>} : memref<76x512xf32, #tpu.memory_space<vmem>>, vector<76x512xf32>,
    } else {
    }
    %3 = tpu.iota {dimensions = array<i32: 1>} : vector<1x256xi32>
    %c16_i32 = arith.constant 16 : i32
    %c0_i32_1 = arith.constant 0 : i32
    %4 = arith.cmpi eq, %c16_i32, %c0_i32_1 : i32
    %c1_i32 = arith.constant 1 : i32
    %5 = arith.select %4, %c1_i32, %c16_i32 : i32
    %6 = vector.broadcast %5 : i32 to vector<1x256xi32>
    %7 = arith.remsi %3, %6 : vector<1x256xi32>
    %c0_i32_2 = arith.constant 0 : i32
    %8 = vector.broadcast %c0_i32_2 : i32 to vector<1x256xi32>
    %9 = arith.cmpi ne, %7, %8 : vector<1x256xi32>
    %c0_i32_3 = arith.constant 0 : i32
    %10 = vector.broadcast %c0_i32_3 : i32 to vector<1x256xi32>
    %11 = arith.cmpi slt, %7, %10 : vector<1x256xi32>
    %c0_i32_4 = arith.constant 0 : i32
    %12 = arith.cmpi slt, %5, %c0_i32_4 : i32
    %13 = vector.broadcast %12 : i1 to vector<1x256xi1>
    %14 = vector.broadcast %13 : vector<1x256xi1> to vector<1x256xi1>
    %15 = arith.xori %11, %14 : vector<1x256xi1>
    %16 = arith.andi %15, %9 : vector<1x256xi1>
    %17 = vector.broadcast %5 : i32 to vector<1x256xi32>
    %18 = arith.addi %7, %17 : vector<1x256xi32>
    %19 = arith.select %16, %18, %7 : vector<1x256xi1>, vector<1x256xi32>
    %c0 = arith.constant 0 : index
    %c0_5 = arith.constant 0 : index
    %c0_6 = arith.constant 0 : index
    %20 = vector.load %arg1[%c0, %c0_5, %c0_6] : memref<1x4x256xf32, #tpu.memory_space<vmem>>, vector<1x4x256xf32>
    %21 = vector.shape_cast %20 : vector<1x4x256xf32> to vector<4x256xf32>
    %c0_7 = arith.constant 0 : index
    %c0_8 = arith.constant 0 : index
    %22 = vector.load %arg4[%c0_7, %c0_8] : memref<8x5xf32, #tpu.memory_space<vmem>>, vector<4x1xf32>
    %c0_9 = arith.constant 0 : index
    %c1 = arith.constant 1 : index
    %23 = vector.load %arg4[%c0_9, %c1] : memref<8x5xf32, #tpu.memory_space<vmem>>, vector<4x1xf32>
    %24 = vector.broadcast %22 : vector<4x1xf32> to vector<4x256xf32>
    %25 = arith.mulf %21, %24 : vector<4x256xf32>
    %26 = vector.broadcast %23 : vector<4x1xf32> to vector<4x256xf32>
    %27 = arith.addf %25, %26 : vector<4x256xf32>
    %cst = arith.constant 0.000000e+00 : f32
    %28 = vector.broadcast %cst : f32 to vector<4x256xf32>
    %29 = arith.maximumf %27, %28 : vector<4x256xf32>
    %c0_i32_10 = arith.constant 0 : i32
    %30 = vector.broadcast %c0_i32_10 : i32 to vector<1x256xi32>
    %31 = arith.cmpi sgt, %19, %30 : vector<1x256xi32>
    %cst_11 = arith.constant 0.000000e+00 : f32
    %32 = vector.broadcast %cst_11 : f32 to vector<4x256xf32>
    %33 = vector.shape_cast %31 : vector<1x256xi1> to vector<1x256xi1>
    %34 = vector.broadcast %33 : vector<1x256xi1> to vector<4x256xi1>
    %35 = arith.select %34, %29, %32 : vector<4x256xi1>, vector<4x256xf32>
    %c15_i32 = arith.constant 15 : i32
    %36 = vector.broadcast %c15_i32 : i32 to vector<1x256xi32>
    %37 = arith.cmpi slt, %19, %36 : vector<1x256xi32>
    %cst_12 = arith.constant 0.000000e+00 : f32
    %38 = vector.broadcast %cst_12 : f32 to vector<4x256xf32>
    %39 = vector.shape_cast %37 : vector<1x256xi1> to vector<1x256xi1>
    %40 = vector.broadcast %39 : vector<1x256xi1> to vector<4x256xi1>
    %41 = arith.select %40, %29, %38 : vector<4x256xi1>, vector<4x256xf32>
    %c0_13 = arith.constant 0 : index
    %c145 = arith.constant 145 : index
    %42 = vector.load %arg6[%c0_13, %c145] : memref<36x512xf32, #tpu.memory_space<vmem>>, vector<4x256xf32>
    tpu.vector_store %arg6[%c0_13, %c145], %41 {strides = array<i32>} : memref<36x512xf32, #tpu.memory_space<vmem>>, vector<4x256xf32>,
    %c4 = arith.constant 4 : index
    %c144 = arith.constant 144 : index
    %43 = vector.load %arg6[%c4, %c144] : memref<36x512xf32, #tpu.memory_space<vmem>>, vector<4x256xf32>
    tpu.vector_store %arg6[%c4, %c144], %29 {strides = array<i32>} : memref<36x512xf32, #tpu.memory_space<vmem>>, vector<4x256xf32>,
    %c8 = arith.constant 8 : index
    %c143 = arith.constant 143 : index
    %44 = vector.load %arg6[%c8, %c143] : memref<36x512xf32, #tpu.memory_space<vmem>>, vector<4x256xf32>
    tpu.vector_store %arg6[%c8, %c143], %35 {strides = array<i32>} : memref<36x512xf32, #tpu.memory_space<vmem>>, vector<4x256xf32>,
    %c12 = arith.constant 12 : index
    %c129 = arith.constant 129 : index
    %45 = vector.load %arg6[%c12, %c129] : memref<36x512xf32, #tpu.memory_space<vmem>>, vector<4x256xf32>
    tpu.vector_store %arg6[%c12, %c129], %41 {strides = array<i32>} : memref<36x512xf32, #tpu.memory_space<vmem>>, vector<4x256xf32>,
    %c16 = arith.constant 16 : index
    %c128 = arith.constant 128 : index
    %46 = vector.load %arg6[%c16, %c128] : memref<36x512xf32, #tpu.memory_space<vmem>>, vector<4x256xf32>
    tpu.vector_store %arg6[%c16, %c128], %29 {strides = array<i32>} : memref<36x512xf32, #tpu.memory_space<vmem>>, vector<4x256xf32>,
    %c20 = arith.constant 20 : index
    %c127 = arith.constant 127 : index
    %47 = vector.load %arg6[%c20, %c127] : memref<36x512xf32, #tpu.memory_space<vmem>>, vector<4x256xf32>
    tpu.vector_store %arg6[%c20, %c127], %35 {strides = array<i32>} : memref<36x512xf32, #tpu.memory_space<vmem>>, vector<4x256xf32>,
    %c24 = arith.constant 24 : index
    %c113 = arith.constant 113 : index
    %48 = vector.load %arg6[%c24, %c113] : memref<36x512xf32, #tpu.memory_space<vmem>>, vector<4x256xf32>
    tpu.vector_store %arg6[%c24, %c113], %41 {strides = array<i32>} : memref<36x512xf32, #tpu.memory_space<vmem>>, vector<4x256xf32>,
    %c28 = arith.constant 28 : index
    %c112 = arith.constant 112 : index
    %49 = vector.load %arg6[%c28, %c112] : memref<36x512xf32, #tpu.memory_space<vmem>>, vector<4x256xf32>
    tpu.vector_store %arg6[%c28, %c112], %29 {strides = array<i32>} : memref<36x512xf32, #tpu.memory_space<vmem>>, vector<4x256xf32>,
    %c32 = arith.constant 32 : index
    %c111 = arith.constant 111 : index
    %50 = vector.load %arg6[%c32, %c111] : memref<36x512xf32, #tpu.memory_space<vmem>>, vector<4x256xf32>
    tpu.vector_store %arg6[%c32, %c111], %35 {strides = array<i32>} : memref<36x512xf32, #tpu.memory_space<vmem>>, vector<4x256xf32>,
    %c0_14 = arith.constant 0 : index
    %c0_15 = arith.constant 0 : index
    %51 = vector.load %arg2[%c0_14, %c0_15] : memref<8x36xf32, #tpu.memory_space<vmem>>, vector<8x36xf32>
    %c0_16 = arith.constant 0 : index
    %c128_17 = arith.constant 128 : index
    %52 = vector.load %arg6[%c0_16, %c128_17] : memref<36x512xf32, #tpu.memory_space<vmem>>, vector<36x256xf32>
    %cst_18 = arith.constant dense<0.000000e+00> : vector<8x256xf32>
    %53 = tpu.matmul %51, %52, %cst_18 {dimension_numbers = #tpu.dot_dimension_numbers<[1], [0], [0], [1], [0, 0, 1, 1], [], []>} : vector<8x36xf32>, vector<36x256xf32>, vector<8x256xf32> -> vector<8x256xf32>
    %c0_19 = arith.constant 0 : index
    %c2 = arith.constant 2 : index
    %54 = vector.load %arg4[%c0_19, %c2] : memref<8x5xf32, #tpu.memory_space<vmem>>, vector<8x1xf32>
    %c0_20 = arith.constant 0 : index
    %c3 = arith.constant 3 : index
    %55 = vector.load %arg4[%c0_20, %c3] : memref<8x5xf32, #tpu.memory_space<vmem>>, vector<8x1xf32>
    %56 = vector.broadcast %54 : vector<8x1xf32> to vector<8x256xf32>
    %57 = arith.mulf %53, %56 : vector<8x256xf32>
    %58 = vector.broadcast %55 : vector<8x1xf32> to vector<8x256xf32>
    %59 = arith.addf %57, %58 : vector<8x256xf32>
    %cst_21 = arith.constant 0.000000e+00 : f32
    %60 = vector.broadcast %cst_21 : f32 to vector<8x256xf32>
    %61 = arith.maximumf %59, %60 : vector<8x256xf32>
    %c0_i32_22 = arith.constant 0 : i32
    %62 = vector.broadcast %c0_i32_22 : i32 to vector<1x256xi32>
    %63 = arith.cmpi sgt, %19, %62 : vector<1x256xi32>
    %cst_23 = arith.constant 0.000000e+00 : f32
    %64 = vector.broadcast %cst_23 : f32 to vector<8x256xf32>
    %65 = vector.shape_cast %63 : vector<1x256xi1> to vector<1x256xi1>
    %66 = vector.broadcast %65 : vector<1x256xi1> to vector<8x256xi1>
    %67 = arith.select %66, %61, %64 : vector<8x256xi1>, vector<8x256xf32>
    %c15_i32_24 = arith.constant 15 : i32
    %68 = vector.broadcast %c15_i32_24 : i32 to vector<1x256xi32>
    %69 = arith.cmpi slt, %19, %68 : vector<1x256xi32>
    %cst_25 = arith.constant 0.000000e+00 : f32
    %70 = vector.broadcast %cst_25 : f32 to vector<8x256xf32>
    %71 = vector.shape_cast %69 : vector<1x256xi1> to vector<1x256xi1>
    %72 = vector.broadcast %71 : vector<1x256xi1> to vector<8x256xi1>
    %73 = arith.select %72, %61, %70 : vector<8x256xi1>, vector<8x256xf32>
    %c0_26 = arith.constant 0 : index
    %c145_27 = arith.constant 145 : index
    %74 = vector.load %arg7[%c0_26, %c145_27] : memref<76x512xf32, #tpu.memory_space<vmem>>, vector<8x256xf32>
    tpu.vector_store %arg7[%c0_26, %c145_27], %73 {strides = array<i32>} : memref<76x512xf32, #tpu.memory_space<vmem>>, vector<8x256xf32>,
    %c8_28 = arith.constant 8 : index
    %c144_29 = arith.constant 144 : index
    %75 = vector.load %arg7[%c8_28, %c144_29] : memref<76x512xf32, #tpu.memory_space<vmem>>, vector<8x256xf32>
    tpu.vector_store %arg7[%c8_28, %c144_29], %61 {strides = array<i32>} : memref<76x512xf32, #tpu.memory_space<vmem>>, vector<8x256xf32>,
    %c16_30 = arith.constant 16 : index
    %c143_31 = arith.constant 143 : index
    %76 = vector.load %arg7[%c16_30, %c143_31] : memref<76x512xf32, #tpu.memory_space<vmem>>, vector<8x256xf32>
    tpu.vector_store %arg7[%c16_30, %c143_31], %67 {strides = array<i32>} : memref<76x512xf32, #tpu.memory_space<vmem>>, vector<8x256xf32>,
    %c24_32 = arith.constant 24 : index
    %c129_33 = arith.constant 129 : index
    %77 = vector.load %arg7[%c24_32, %c129_33] : memref<76x512xf32, #tpu.memory_space<vmem>>, vector<8x256xf32>
    tpu.vector_store %arg7[%c24_32, %c129_33], %73 {strides = array<i32>} : memref<76x512xf32, #tpu.memory_space<vmem>>, vector<8x256xf32>,
    %c32_34 = arith.constant 32 : index
    %c128_35 = arith.constant 128 : index
    %78 = vector.load %arg7[%c32_34, %c128_35] : memref<76x512xf32, #tpu.memory_space<vmem>>, vector<8x256xf32>
    tpu.vector_store %arg7[%c32_34, %c128_35], %61 {strides = array<i32>} : memref<76x512xf32, #tpu.memory_space<vmem>>, vector<8x256xf32>,
    %c40 = arith.constant 40 : index
    %c127_36 = arith.constant 127 : index
    %79 = vector.load %arg7[%c40, %c127_36] : memref<76x512xf32, #tpu.memory_space<vmem>>, vector<8x256xf32>
    tpu.vector_store %arg7[%c40, %c127_36], %67 {strides = array<i32>} : memref<76x512xf32, #tpu.memory_space<vmem>>, vector<8x256xf32>,
    %c48 = arith.constant 48 : index
    %c113_37 = arith.constant 113 : index
    %80 = vector.load %arg7[%c48, %c113_37] : memref<76x512xf32, #tpu.memory_space<vmem>>, vector<8x256xf32>
    tpu.vector_store %arg7[%c48, %c113_37], %73 {strides = array<i32>} : memref<76x512xf32, #tpu.memory_space<vmem>>, vector<8x256xf32>,
    %c56 = arith.constant 56 : index
    %c112_38 = arith.constant 112 : index
    %81 = vector.load %arg7[%c56, %c112_38] : memref<76x512xf32, #tpu.memory_space<vmem>>, vector<8x256xf32>
    tpu.vector_store %arg7[%c56, %c112_38], %61 {strides = array<i32>} : memref<76x512xf32, #tpu.memory_space<vmem>>, vector<8x256xf32>,
    %c64 = arith.constant 64 : index
    %c111_39 = arith.constant 111 : index
    %82 = vector.load %arg7[%c64, %c111_39] : memref<76x512xf32, #tpu.memory_space<vmem>>, vector<8x256xf32>
    tpu.vector_store %arg7[%c64, %c111_39], %67 {strides = array<i32>} : memref<76x512xf32, #tpu.memory_space<vmem>>, vector<8x256xf32>,
    %c72 = arith.constant 72 : index
    %c128_40 = arith.constant 128 : index
    %83 = vector.load %arg7[%c72, %c128_40] : memref<76x512xf32, #tpu.memory_space<vmem>>, vector<4x256xf32>
    tpu.vector_store %arg7[%c72, %c128_40], %21 {strides = array<i32>} : memref<76x512xf32, #tpu.memory_space<vmem>>, vector<4x256xf32>,
    %c0_41 = arith.constant 0 : index
    %c0_42 = arith.constant 0 : index
    %84 = vector.load %arg3[%c0_41, %c0_42] : memref<8x76xf32, #tpu.memory_space<vmem>>, vector<8x76xf32>
    %c0_43 = arith.constant 0 : index
    %c128_44 = arith.constant 128 : index
    %85 = vector.load %arg7[%c0_43, %c128_44] : memref<76x512xf32, #tpu.memory_space<vmem>>, vector<76x256xf32>
    %cst_45 = arith.constant dense<0.000000e+00> : vector<8x256xf32>
    %86 = tpu.matmul %84, %85, %cst_45 {dimension_numbers = #tpu.dot_dimension_numbers<[1], [0], [0], [1], [0, 0, 1, 1], [], []>} : vector<8x76xf32>, vector<76x256xf32>, vector<8x256xf32> -> vector<8x256xf32>
    %c0_46 = arith.constant 0 : index
    %c4_47 = arith.constant 4 : index
    %87 = vector.load %arg4[%c0_46, %c4_47] : memref<8x5xf32, #tpu.memory_space<vmem>>, vector<8x1xf32>
    %88 = vector.broadcast %87 : vector<8x1xf32> to vector<8x256xf32>
    %89 = arith.addf %86, %88 : vector<8x256xf32>
    %c0_48 = arith.constant 0 : index
    %c0_49 = arith.constant 0 : index
    %c0_50 = arith.constant 0 : index
    %90 = vector.load %arg5[%c0_48, %c0_49, %c0_50] : memref<1x8x256xf32, #tpu.memory_space<vmem>>, vector<1x8x256xf32>
    %91 = vector.shape_cast %90 : vector<1x8x256xf32> to vector<8x256xf32>
    %92 = vector.shape_cast %89 : vector<8x256xf32> to vector<1x8x256xf32>
    tpu.vector_store %arg5[%c0_48, %c0_49, %c0_50], %92 {strides = array<i32>} : memref<1x8x256xf32, #tpu.memory_space<vmem>>, vector<1x8x256xf32>,
    return
  }
  func.func @transform_0(%arg0: i32) -> (i32, i32, i32) {
    %c0_i32 = arith.constant 0 : i32
    %c0_i32_0 = arith.constant 0 : i32
    %c0_i32_1 = arith.constant 0 : i32
    return %arg0, %c0_i32, %c0_i32_0 : i32, i32, i32
  }
  func.func @transform_1(%arg0: i32) -> (i32, i32) {
    %c0_i32 = arith.constant 0 : i32
    %c0_i32_0 = arith.constant 0 : i32
    %c0_i32_1 = arith.constant 0 : i32
    return %c0_i32, %c0_i32_0 : i32, i32
  }
  func.func @transform_2(%arg0: i32) -> (i32, i32) {
    %c0_i32 = arith.constant 0 : i32
    %c0_i32_0 = arith.constant 0 : i32
    %c0_i32_1 = arith.constant 0 : i32
    return %c0_i32, %c0_i32_0 : i32, i32
  }
  func.func @transform_3(%arg0: i32) -> (i32, i32) {
    %c0_i32 = arith.constant 0 : i32
    %c0_i32_0 = arith.constant 0 : i32
    %c0_i32_1 = arith.constant 0 : i32
    return %c0_i32, %c0_i32_0 : i32, i32
  }
  func.func @transform_4(%arg0: i32) -> (i32, i32, i32) {
    %c0_i32 = arith.constant 0 : i32
    %c0_i32_0 = arith.constant 0 : i32
    %c0_i32_1 = arith.constant 0 : i32
    return %arg0, %c0_i32, %c0_i32_0 : i32, i32, i32
  }
}

</mosaic_0001>

<llo_original>
// kernel: residual_block_forward.1
$region0: #{residual_block_forward.1}
  #allocation0 [shape = 'u32[]', space=smem, size = 0x4, offset = 0x4, fixed_abs, tag = 'smem constant byte address 0x4 - core index']
  #allocation1 [shape = 'u32[144,128]{1,0:T(1,128)}', space=vmem, size = 0x12000, scoped, tag = 'internal scratch']
  #allocation2 [shape = 'f32[36,512]{1,0:T(8,128)}', space=vmem, size = 0x14000, scoped, tag = 'scratch operand']
  #allocation3 [shape = 'f32[76,512]{1,0:T(8,128)}', space=vmem, size = 0x28000, scoped, tag = 'scratch operand']
  %s0 = inlined_call_operand.vmem [shape: f32[2,4,256], index: 0, kind: input, shape index: {}]
  %s1 = inlined_call_operand.vmem [shape: f32[8,36], index: 1, kind: input, shape index: {}]
  %s2 = inlined_call_operand.vmem [shape: f32[8,76], index: 2, kind: input, shape index: {}]
  %s3 = inlined_call_operand.vmem [shape: f32[8,5], index: 3, kind: input, shape index: {}]
  %s4 = inlined_call_operand.vmem [shape: f32[2,8,256], index: 4, kind: output, shape index: {}]
  %s5 = sld [smem:[#allocation0]]
  $region53: #{residual_block_forward.1} parent=0
    _
  %s7 = ssub.s32 1, %s5
  %s8 = scalar_select 0, %s7, %s5
  loop: start=0, step=1, limit=4
  $region2: #{residual_block_forward.1} parent=0 // loop_pre_header
    _
  $region3: #{residual_block_forward.1} parent=0 // loop_header
    %s10 = sphi 0, %s14
    %p11 = scmp.ge.s32.totalorder %s10, 4
    %s20 = sphi 0, %s22
    %s23 = sphi 0, %s20
    %s24 = sphi 0, %s23
    %s40 = sphi 0, %s24
    %s44 = sphi 0, %s44
    %s46 = sphi 0, %s44
    %s47 = sphi 0, %s46
    %s61 = sphi 0, %s47
    %s65 = sphi 0, %s65
    %s67 = sphi 0, %s65
    %s68 = sphi 0, %s67
    %s82 = sphi 0, %s68
    %s86 = sphi 0, %s86
    %s88 = sphi 0, %s86
    %s89 = sphi 0, %s88
    %s103 = sphi 0, %s89
    %s109 = sphi 0, %s111
    %s112 = sphi 0, %s109
    %s113 = sphi 0, %s112
    %s129 = sphi 0, %s113
  $region4: #{residual_block_forward.1} parent=0 // loop_header_branch
    %13 = sbr.rel (%p11) target = $region8
  $region5: #{residual_block_forward.1} parent=0 // loop_body
    %s15 = ssub.s32 %s10, 1
    %s16 = ssub.s32 %s10, 2
    %s17 = sadd.s32 %s10, 1
    %s18 = ssub.s32 %s10, %s17
    %p19 = scmp.eq.s32.totalorder %s18, 0
    %s21 = sadd.s32 %s20, 1
    %s22 = scalar_select %p19, %s20, %s21
    %p25 = pneg %p19
    %p26 = scmp.eq.s32.totalorder %s10, 1
    %p27 = por %p25, %p26
    %p28 = scmp.ne.s32.totalorder %s20, %s23
    %p29 = scmp.eq.s32.totalorder %s10, 0
    %p30 = por %p28, %p29
    %p31 = scmp.ne.s32.totalorder %s20, %s23
    %p32 = scmp.eq.s32.totalorder %s15, 1
    %p33 = por %p31, %p32
    %p34 = scmp.ne.s32.totalorder %s23, %s24
    %p35 = scmp.eq.s32.totalorder %s15, 0
    %p36 = por %p34, %p35
    %p37 = scmp.ne.s32.totalorder %s23, %s24
    %p38 = scmp.eq.s32.totalorder %s16, 1
    %p39 = por %p37, %p38
    %p41 = scmp.ne.s32.totalorder %s24, %s40
    %p42 = scmp.eq.s32.totalorder %s16, 0
    %p43 = por %p41, %p42
    %s45 = sadd.s32 %s44, 1
    %p48 = scmp.eq.s32.totalorder %s10, 1
    %p49 = scmp.ne.s32.totalorder %s44, %s46
    %p50 = scmp.eq.s32.totalorder %s10, 0
    %p51 = por %p49, %p50
    %p52 = scmp.ne.s32.totalorder %s44, %s46
    %p53 = scmp.eq.s32.totalorder %s15, 1
    %p54 = por %p52, %p53
    %p55 = scmp.ne.s32.totalorder %s46, %s47
    %p56 = scmp.eq.s32.totalorder %s15, 0
    %p57 = por %p55, %p56
    %p58 = scmp.ne.s32.totalorder %s46, %s47
    %p59 = scmp.eq.s32.totalorder %s16, 1
    %p60 = por %p58, %p59
    %p62 = scmp.ne.s32.totalorder %s47, %s61
    %p63 = scmp.eq.s32.totalorder %s16, 0
    %p64 = por %p62, %p63
    %s66 = sadd.s32 %s65, 1
    %p69 = scmp.eq.s32.totalorder %s10, 1
    %p70 = scmp.ne.s32.totalorder %s65, %s67
    %p71 = scmp.eq.s32.totalorder %s10, 0
    %p72 = por %p70, %p71
    %p73 = scmp.ne.s32.totalorder %s65, %s67
    %p74 = scmp.eq.s32.totalorder %s15, 1
    %p75 = por %p73, %p74
    %p76 = scmp.ne.s32.totalorder %s67, %s68
    %p77 = scmp.eq.s32.totalorder %s15, 0
    %p78 = por %p76, %p77
    %p79 = scmp.ne.s32.totalorder %s67, %s68
    %p80 = scmp.eq.s32.totalorder %s16, 1
    %p81 = por %p79, %p80
    %p83 = scmp.ne.s32.totalorder %s68, %s82
    %p84 = scmp.eq.s32.totalorder %s16, 0
    %p85 = por %p83, %p84
    %s87 = sadd.s32 %s86, 1
    %p90 = scmp.eq.s32.totalorder %s10, 1
    %p91 = scmp.ne.s32.totalorder %s86, %s88
    %p92 = scmp.eq.s32.totalorder %s10, 0
    %p93 = por %p91, %p92
    %p94 = scmp.ne.s32.totalorder %s86, %s88
    %p95 = scmp.eq.s32.totalorder %s15, 1
    %p96 = por %p94, %p95
    %p97 = scmp.ne.s32.totalorder %s88, %s89
    %p98 = scmp.eq.s32.totalorder %s15, 0
    %p99 = por %p97, %p98
    %p100 = scmp.ne.s32.totalorder %s88, %s89
    %p101 = scmp.eq.s32.totalorder %s16, 1
    %p102 = por %p100, %p101
    %p104 = scmp.ne.s32.totalorder %s89, %s103
    %p105 = scmp.eq.s32.totalorder %s16, 0
    %p106 = por %p104, %p105
    %s107 = ssub.s32 %s10, %s17
    %p108 = scmp.eq.s32.totalorder %s107, 0
    %s110 = sadd.s32 %s109, 1
    %s111 = scalar_select %p108, %s109, %s110
    %p114 = pneg %p108
    %p115 = scmp.eq.s32.totalorder %s10, 1
    %p116 = por %p114, %p115
    %p117 = scmp.ne.s32.totalorder %s109, %s112
    %p118 = scmp.eq.s32.totalorder %s10, 0
    %p119 = por %p117, %p118
    %p120 = scmp.ne.s32.totalorder %s109, %s112
    %p121 = scmp.eq.s32.totalorder %s15, 1
    %p122 = por %p120, %p121
    %p123 = scmp.ne.s32.totalorder %s112, %s113
    %p124 = scmp.eq.s32.totalorder %s15, 0
    %p125 = por %p123, %p124
    %p126 = scmp.ne.s32.totalorder %s112, %s113
    %p127 = scmp.eq.s32.totalorder %s16, 1
    %p128 = por %p126, %p127
    %p130 = scmp.ne.s32.totalorder %s113, %s129
    %p131 = scmp.eq.s32.totalorder %s16, 0
    %p132 = por %p130, %p131
    %p133 = scmp.le.s32.totalorder 1, %s10
    %p134 = scmp.lt.s32.totalorder %s10, 3
    %p135 = pnand %p133, %p134
    %p136 = pneg %p135
    // Predicated region
    $region9: #{residual_block_forward.1} parent=5 // pred_check
      _
    $region10: #{residual_block_forward.1} parent=5 // pred_check_branch
      %138 = sbr.rel (%p135) target = $region12
    $region11: #{residual_block_forward.1} parent=5 // pred_region
      %s139 = ssub.s32 %s10, 1
      // Predicated region
      $region13: #{residual_block_forward.1} parent=11 // pred_check
        %p140 = pneg %p57
      $region14: #{residual_block_forward.1} parent=11 // pred_check_branch
        %142 = sbr.rel (%p140) target = $region16
      $region15: #{residual_block_forward.1} parent=11 // pred_region
        _
      $region16: #{residual_block_forward.1} parent=11 // pred_fallthru
        _
      // Predicated region
      $region17: #{residual_block_forward.1} parent=11 // pred_check
        %p143 = pneg %p78
      $region18: #{residual_block_forward.1} parent=11 // pred_check_branch
        %145 = sbr.rel (%p143) target = $region20
      $region19: #{residual_block_forward.1} parent=11 // pred_region
        _
      $region20: #{residual_block_forward.1} parent=11 // pred_fallthru
        _
      // Predicated region
      $region21: #{residual_block_forward.1} parent=11 // pred_check
        %p146 = pneg %p99
      $region22: #{residual_block_forward.1} parent=11 // pred_check_branch
        %148 = sbr.rel (%p146) target = $region24
      $region23: #{residual_block_forward.1} parent=11 // pred_region
        _
      $region24: #{residual_block_forward.1} parent=11 // pred_fallthru
        _
    $region12: #{residual_block_forward.1} parent=5 // pred_fallthru
      _
    %p149 = scmp.lt.s32.totalorder %s10, 2
    // Predicated region
    $region25: #{residual_block_forward.1} parent=5 // pred_check
      %p150 = pneg %p149
    $region26: #{residual_block_forward.1} parent=5 // pred_check_branch
      %152 = sbr.rel (%p150) target = $region28
    $region27: #{residual_block_forward.1} parent=5 // pred_region
      // Predicated region
      $region29: #{residual_block_forward.1} parent=27 // pred_check
        %p153 = pneg %p30
      $region30: #{residual_block_forward.1} parent=27 // pred_check_branch
        %155 = sbr.rel (%p153) target = $region32
      $region31: #{residual_block_forward.1} parent=27 // pred_region
        %p156 = scmp.lt.s32.totalorder %s10, 1
        %s157 = scalar_select %p156, %s10, 1
        %s158 = smul.addr %s157, 2
        %s159 = smul.addr %s158, 4
        %s160 = scalar_lea.vmem %s0, %s159
      $region32: #{residual_block_forward.1} parent=27 // pred_fallthru
        _
    $region28: #{residual_block_forward.1} parent=5 // pred_fallthru
      _
    %p161 = scmp.le.s32.totalorder 1, %s10
    %p162 = scmp.lt.s32.totalorder %s10, 3
    %p163 = pnand %p161, %p162
    %p164 = pneg %p163
    // Predicated region
    $region33: #{residual_block_forward.1} parent=5 // pred_check
      _
    $region34: #{residual_block_forward.1} parent=5 // pred_check_branch
      %166 = sbr.rel (%p163) target = $region36
    $region35: #{residual_block_forward.1} parent=5 // pred_region
      %s167 = ssub.s32 %s10, 1
      %p168 = scmp.lt.s32.totalorder %s15, 1
      %s169 = scalar_select %p168, %s15, 1
      %s170 = smul.addr %s169, 2
      %s171 = smul.addr %s170, 4
      %s172 = scalar_lea.vmem %s0, %s171
      %p173 = pneg %p36
      %p174 = pneg %p33
      %p175 = pneg %p57
      %p176 = pneg %p54
      %p177 = pneg %p78
      %p178 = pneg %p75
      %p179 = pneg %p99
      %p180 = pneg %p96
      %p181 = pneg %p125
      %p182 = pneg %p122
      %p183 = scmp.lt.s32.totalorder %s15, 1
      %s184 = scalar_select %p183, %s15, 1
      %s185 = smul.addr %s184, 2
      %s186 = smul.addr %s185, 8
      %s187 = scalar_lea.vmem %s4, %s186
      %p188 = scmp.lt.s32.totalorder %s15, 1
      %s189 = scalar_select %p188, %s15, 1
      %s190 = smul.addr %s189, 2
      %s191 = smul.addr %s190, 4
      %s192 = scalar_lea.vmem %s0, %s191
      %p193 = scmp.lt.s32.totalorder %s15, 1
      %s194 = scalar_select %p193, %s15, 1
      %s195 = smul.addr %s194, 2
      %s196 = smul.addr %s195, 8
      %s197 = scalar_lea.vmem %s4, %s196
      %p198 = scmp.eq.s32.totalorder %s15, 0
      // Predicated region
      $region37: #{residual_block_forward.1} parent=35 // pred_check
        %p199 = pneg %p198
      $region38: #{residual_block_forward.1} parent=35 // pred_check_branch
        %201 = sbr.rel (%p199) target = $region40
      $region39: #{residual_block_forward.1} parent=35 // pred_region
        %202 = vst [vmem:[#allocation2] sm:$0xff] 0.0
        %203 = vst [vmem:[#allocation2 + $0x8] sm:$0xff] 0.0
        %204 = vst [vmem:[#allocation2 + $0x10] sm:$0xff] 0.0
        %205 = vst [vmem:[#allocation2 + $0x18] sm:$0xff] 0.0
        %206 = vst [vmem:[#allocation2 + $0x20] sm:$0xff] 0.0
        %207 = vst [vmem:[#allocation2 + $0x28] sm:$0xff] 0.0
        %208 = vst [vmem:[#allocation2 + $0x30] sm:$0xff] 0.0
        %209 = vst [vmem:[#allocation2 + $0x38] sm:$0xff] 0.0
        %210 = vst [vmem:[#allocation2 + $0x40] sm:$0xff] 0.0
        %211 = vst [vmem:[#allocation2 + $0x48] sm:$0xff] 0.0
        %212 = vst [vmem:[#allocation2 + $0x50] sm:$0xff] 0.0
        %213 = vst [vmem:[#allocation2 + $0x58] sm:$0xff] 0.0
        %214 = vst [vmem:[#allocation2 + $0x60] sm:$0xff] 0.0
        %215 = vst [vmem:[#allocation2 + $0x68] sm:$0xff] 0.0
        %216 = vst [vmem:[#allocation2 + $0x70] sm:$0xff] 0.0
        %217 = vst [vmem:[#allocation2 + $0x78] sm:$0xff] 0.0
        %218 = vst [vmem:[#allocation2 + $0x80] sm:$0xf] 0.0
        %219 = vst [vmem:[#allocation2 + $0x88] sm:$0xf] 0.0
        %220 = vst [vmem:[#allocation2 + $0x90] sm:$0xf] 0.0
        %221 = vst [vmem:[#allocation2 + $0x98] sm:$0xf] 0.0
        %222 = vst [vmem:[#allocation3] sm:$0xff] 0.0
        %223 = vst [vmem:[#allocation3 + $0x8] sm:$0xff] 0.0
        %224 = vst [vmem:[#allocation3 + $0x10] sm:$0xff] 0.0
        %225 = vst [vmem:[#allocation3 + $0x18] sm:$0xff] 0.0
        %226 = vst [vmem:[#allocation3 + $0x20] sm:$0xff] 0.0
        %227 = vst [vmem:[#allocation3 + $0x28] sm:$0xff] 0.0
        %228 = vst [vmem:[#allocation3 + $0x30] sm:$0xff] 0.0
        %229 = vst [vmem:[#allocation3 + $0x38] sm:$0xff] 0.0
        %230 = vst [vmem:[#allocation3 + $0x40] sm:$0xff] 0.0
        %231 = vst [vmem:[#allocation3 + $0x48] sm:$0xff] 0.0
        %232 = vst [vmem:[#allocation3 + $0x50] sm:$0xff] 0.0
        %233 = vst [vmem:[#allocation3 + $0x58] sm:$0xff] 0.0
        %234 = vst [vmem:[#allocation3 + $0x60] sm:$0xff] 0.0
        %235 = vst [vmem:[#allocation3 + $0x68] sm:$0xff] 0.0
        %236 = vst [vmem:[#allocation3 + $0x70] sm:$0xff] 0.0
        %237 = vst [vmem:[#allocation3 + $0x78] sm:$0xff] 0.0
        %238 = vst [vmem:[#allocation3 + $0x80] sm:$0xff] 0.0
        %239 = vst [vmem:[#allocation3 + $0x88] sm:$0xff] 0.0
        %240 = vst [vmem:[#allocation3 + $0x90] sm:$0xff] 0.0
        %241 = vst [vmem:[#allocation3 + $0x98] sm:$0xff] 0.0
        %242 = vst [vmem:[#allocation3 + $0xa0] sm:$0xff] 0.0
        %243 = vst [vmem:[#allocation3 + $0xa8] sm:$0xff] 0.0
        %244 = vst [vmem:[#allocation3 + $0xb0] sm:$0xff] 0.0
        %245 = vst [vmem:[#allocation3 + $0xb8] sm:$0xff] 0.0
        %246 = vst [vmem:[#allocation3 + $0xc0] sm:$0xff] 0.0
        %247 = vst [vmem:[#allocation3 + $0xc8] sm:$0xff] 0.0
        %248 = vst [vmem:[#allocation3 + $0xd0] sm:$0xff] 0.0
        %249 = vst [vmem:[#allocation3 + $0xd8] sm:$0xff] 0.0
        %250 = vst [vmem:[#allocation3 + $0xe0] sm:$0xff] 0.0
        %251 = vst [vmem:[#allocation3 + $0xe8] sm:$0xff] 0.0
        %252 = vst [vmem:[#allocation3 + $0xf0] sm:$0xff] 0.0
        %253 = vst [vmem:[#allocation3 + $0xf8] sm:$0xff] 0.0
        %254 = vst [vmem:[#allocation3 + $0x100] sm:$0xff] 0.0
        %255 = vst [vmem:[#allocation3 + $0x108] sm:$0xff] 0.0
        %256 = vst [vmem:[#allocation3 + $0x110] sm:$0xff] 0.0
        %257 = vst [vmem:[#allocation3 + $0x118] sm:$0xff] 0.0
        %258 = vst [vmem:[#allocation3 + $0x120] sm:$0xf] 0.0
        %259 = vst [vmem:[#allocation3 + $0x128] sm:$0xf] 0.0
        %260 = vst [vmem:[#allocation3 + $0x130] sm:$0xf] 0.0
        %261 = vst [vmem:[#allocation3 + $0x138] sm:$0xf] 0.0
      $region40: #{residual_block_forward.1} parent=35 // pred_fallthru
        _
      %v262 = vlaneseq
      %v263 = vand.u32 %v262, 127
      %v264 = vadd.s32 %v263, 128
      %vm265 = vcmp.lt.s32.totalorder %v263, 0
      %v266 = vsub.s32 0, %v263
      %v267 = vsel %vm265, %v266, %v263
      %v268 = vshrl.u32 %v267, 4
      %v269 = vand.u32 %v267, 15
      %v270 = vsub.s32 0, %v269
      %v271 = vsel %vm265, %v270, %v269
      %vm272 = vcmp.lt.s32.totalorder %v264, 0
      %v273 = vsub.s32 0, %v264
      %v274 = vsel %vm272, %v273, %v264
      %v275 = vshrl.u32 %v274, 4
      %v276 = vand.u32 %v274, 15
      %v277 = vsub.s32 0, %v276
      %v278 = vsel %vm272, %v277, %v276
      %vm279 = vcmp.ne.s32.totalorder %v271, 0
      %vm280 = vcmp.ne.s32.totalorder %v278, 0
      %vm281 = vcmp.lt.s32.totalorder %v271, 0
      %vm282 = vcmp.lt.s32.totalorder %v278, 0
      %vm283 = vmand %vm281, %vm279
      %vm284 = vmand %vm282, %vm280
      %v285 = vadd.s32 %v271, 16
      %v286 = vadd.s32 %v278, 16
      %v287 = vsel %vm283, %v285, %v271
      %v288 = vsel %vm284, %v286, %v278
      %v289 = vld [vmem:[%s192] sm:$0xff]
      %v290 = vld [vmem:[%s3] sm:$0xf]
      %292 = vset.pattern.permute.xlu0 0
      %293 = vperm.xlu0 %292, %v290
      %v294 = vpop.permute.xlu0 %293
      %v296 = vunpack.c.l.s4 839922192
      %v297 = vunpack.c.0.s8 %v296
      %v298 = vlaneseq
      %v299 = vshrl.u32 %v298, 7
      %v300 = vsub.s32 %v297, %v299
      %v301 = vrot.slane %v294, %v300
      %v303 = vmul.f32 %v289, %v301
      %304 = vset.pattern.permute.xlu0 1
      %305 = vperm.xlu0 %304, %v290
      %v306 = vpop.permute.xlu0 %305
      %v308 = vunpack.c.l.s4 839922192
      %v309 = vunpack.c.0.s8 %v308
      %v310 = vlaneseq
      %v311 = vshrl.u32 %v310, 7
      %v312 = vsub.s32 %v309, %v311
      %v313 = vrot.slane %v306, %v312
      %v315 = vadd.f32 %v303, %v313
      %v316 = vmax.f32 %v315, 0.0
      %vm317 = vcmp.gt.s32.totalorder %v287, 0
      %vm318 = vcmp.gt.s32.totalorder %v288, 0
      %v319 = vsel %vm317, 1, 0
      %v320 = vsel %vm318, 1, 0
      %vm321 = vcmp.eq.s32.totalorder %v319, 1
      %vm322 = vcmp.eq.s32.totalorder %v320, 1
      %v324 = vcombine.high %v316, %v316
      %v326 = vsel %vm321, %v316, 0.0
      %v327 = vsel %vm322, %v324, 0.0
      %vm328 = vcmp.lt.s32.totalorder %v287, 15
      %vm329 = vcmp.lt.s32.totalorder %v288, 15
      %v330 = vsel %vm328, 1, 0
      %v331 = vsel %vm329, 1, 0
      %vm332 = vcmp.eq.s32.totalorder %v330, 1
      %vm333 = vcmp.eq.s32.totalorder %v331, 1
      %v334 = vsel %vm332, %v316, 0.0
      %v335 = vsel %vm333, %v324, 0.0
      %338 = vrot.lane.b32.xlu0 %v334, 17
      %v339 = vpop.permute.xlu0 %338
      %340 = vrot.lane.b32.xlu0 %v335, 17
      %v341 = vpop.permute.xlu0 %340
      %vm342 = vcmask 138240
      %v343 = vsel %vm342, %v339, %v341
      %vm347 = vcmask 1043592
      %348 = vst.msk [vmem:[#allocation2 + $0x8] sm:$0xf] %vm347, %v339
      %349 = vst [vmem:[#allocation2 + $0x10] sm:$0xf] %v343
      %vm350 = vcmask 134144
      %351 = vst.msk [vmem:[#allocation2 + $0x18] sm:$0xf] %vm350, %v341
      %v352 = vcombine.low %v316, %v316
      %353 = vrot.lane.b32.xlu0 %v352, 16
      %v354 = vpop.permute.xlu0 %353
      %355 = vrot.lane.b32.xlu0 %v316, 16
      %v356 = vpop.permute.xlu0 %355
      %vm357 = vcmask 130048
      %v358 = vsel %vm357, %v354, %v356
      %vm362 = vcmask 1047684
      %363 = vst.msk [vmem:[#allocation2 + $0x8] sm:$0xf0] %vm362, %v354
      %364 = vst [vmem:[#allocation2 + $0x10] sm:$0xf0] %v358
      %vm365 = vcmask 130052
      %366 = vst.msk [vmem:[#allocation2 + $0x18] sm:$0xf0] %vm365, %v356
      %369 = vrot.lane.b32.xlu0 %v326, 15
      %v370 = vpop.permute.xlu0 %369
      %371 = vrot.lane.b32.xlu0 %v327, 15
      %v372 = vpop.permute.xlu0 %371
      %vm373 = vcmask 121856
      %v374 = vsel %vm373, %v370, %v372
      %vm378 = vcmask 1043576
      %379 = vst.msk [vmem:[#allocation2 + $0x28] sm:$0xf] %vm378, %v370
      %380 = vst [vmem:[#allocation2 + $0x30] sm:$0xf] %v374
      %vm381 = vcmask 117760
      %382 = vst.msk [vmem:[#allocation2 + $0x38] sm:$0xf] %vm381, %v372
      %v383 = vrot.slane %v334, 4
      %v384 = vrot.slane %v335, 4
      %385 = vrot.lane.b32.xlu0 %v383, 1
      %v386 = vpop.permute.xlu0 %385
      %387 = vrot.lane.b32.xlu0 %v384, 1
      %v388 = vpop.permute.xlu0 %387
      %vm389 = vcmask 7168
      %v390 = vsel %vm389, %v386, %v388
      %vm394 = vcmask 1047564
      %395 = vst.msk [vmem:[#allocation2 + $0x28] sm:$0xf0] %vm394, %v386
      %396 = vst [vmem:[#allocation2 + $0x30] sm:$0xf0] %v390
      %vm397 = vcmask 7172
      %398 = vst.msk [vmem:[#allocation2 + $0x38] sm:$0xf0] %vm397, %v388
      %399 = vst [vmem:[#allocation2 + $0x48] sm:$0xf] %v316
      %400 = vst [vmem:[#allocation2 + $0x50] sm:$0xf] %v324
      %v401 = vrot.slane %v326, 4
      %v402 = vrot.slane %v327, 4
      %403 = vrot.lane.b32.xlu0 %v401, 127
      %v404 = vpop.permute.xlu0 %403
      %405 = vrot.lane.b32.xlu0 %v402, 127
      %v406 = vpop.permute.xlu0 %405
      %vm407 = vcmask 1039360
      %v408 = vsel %vm407, %v404, %v406
      %vm412 = vcmask 1048572
      %413 = vst.msk [vmem:[#allocation2 + $0x40] sm:$0xf0] %vm412, %v404
      %414 = vst [vmem:[#allocation2 + $0x48] sm:$0xf0] %v408
      %vm415 = vcmask 1039364
      %416 = vst.msk [vmem:[#allocation2 + $0x50] sm:$0xf0] %vm415, %v406
      %417 = vrot.lane.b32.xlu0 %v334, 113
      %v418 = vpop.permute.xlu0 %417
      %419 = vrot.lane.b32.xlu0 %v335, 113
      %v420 = vpop.permute.xlu0 %419
      %vm421 = vcmask 924672
      %v422 = vsel %vm421, %v418, %v420
      %vm426 = vcmask 1044360
      %427 = vst.msk [vmem:[#allocation2 + $0x60] sm:$0xf] %vm426, %v418
      %428 = vst [vmem:[#allocation2 + $0x68] sm:$0xf] %v422
      %vm429 = vcmask 920576
      %430 = vst.msk [vmem:[#allocation2 + $0x70] sm:$0xf] %vm429, %v420
      %431 = vrot.lane.b32.xlu0 %v352, 112
      %v432 = vpop.permute.xlu0 %431
      %433 = vrot.lane.b32.xlu0 %v316, 112
      %v434 = vpop.permute.xlu0 %433
      %vm435 = vcmask 916480
      %v436 = vsel %vm435, %v432, %v434
      %vm440 = vcmask 1048452
      %441 = vst.msk [vmem:[#allocation2 + $0x60] sm:$0xf0] %vm440, %v432
      %442 = vst [vmem:[#allocation2 + $0x68] sm:$0xf0] %v436
      %vm443 = vcmask 916484
      %444 = vst.msk [vmem:[#allocation2 + $0x70] sm:$0xf0] %vm443, %v434
      %445 = vrot.lane.b32.xlu0 %v326, 111
      %v446 = vpop.permute.xlu0 %445
      %447 = vrot.lane.b32.xlu0 %v327, 111
      %v448 = vpop.permute.xlu0 %447
      %vm449 = vcmask 908288
      %v450 = vsel %vm449, %v446, %v448
      %vm454 = vcmask 1044344
      %455 = vst.msk [vmem:[#allocation2 + $0x80] sm:$0xf] %vm454, %v446
      %456 = vst [vmem:[#allocation2 + $0x88] sm:$0xf] %v450
      %vm457 = vcmask 904192
      %458 = vst.msk [vmem:[#allocation2 + $0x90] sm:$0xf] %vm457, %v448
      %v459 = vld [vmem:[%s1] sm:$0xff]
      %v460 = vld [vmem:[#allocation2 + $0x8] sm:$0xff]
      %v461 = vld [vmem:[#allocation2 + $0x10] sm:$0xff]
      %v462 = vld [vmem:[#allocation2 + $0x28] sm:$0xff]
      %v463 = vld [vmem:[#allocation2 + $0x30] sm:$0xff]
      %v464 = vld [vmem:[#allocation2 + $0x48] sm:$0xff]
      %v465 = vld [vmem:[#allocation2 + $0x50] sm:$0xff]
      %v466 = vld [vmem:[#allocation2 + $0x68] sm:$0xff]
      %v467 = vld [vmem:[#allocation2 + $0x70] sm:$0xff]
      %v468 = vld [vmem:[#allocation2 + $0x88] sm:$0xf]
      %v469 = vld [vmem:[#allocation2 + $0x90] sm:$0xf]
      %vm470 = vcmask 293888
      %v472 = vsel %vm470, %v459, 0
      %vm474 = vcmask 1043456
      %v476 = vsel %vm474, %v468, 0
      %v479 = vsel %vm474, %v469, 0
      %481 = vmatprep.subr.mxu0 %v461
      %482 = vmatpush1.msra.mxu0 %v460
      %483 = vmatprep.subr.mxu0 %v463
      %484 = vmatpush1.msra.mxu0 %v462
      %485 = vmatprep.subr.mxu0 %v465
      %486 = vmatpush1.msra.mxu0 %v464
      %487 = vmatprep.subr.mxu0 %v467
      %488 = vmatpush1.msra.mxu0 %v466
      %489 = vmatprep.subr.mxu0 %v479
      %490 = vmatpush1.msra.mxu0 %v476
      %491 = vmatprep.subr.mxu0 0.0
      %492 = vmatpush1.msra.mxu0 0.0
      %493 = vmatprep.subr.mxu0 0.0
      %494 = vmatpush1.msra.mxu0 0.0
      %495 = vmatprep.subr.mxu0 0.0
      %496 = vmatpush1.msra.mxu0 0.0
      %497 = vmatprep.subr.mxu0 0.0
      %498 = vmatpush1.msra.mxu0 0.0
      %499 = vmatprep.subr.mxu0 0.0
      %500 = vmatpush1.msra.mxu0 0.0
      %501 = vmatprep.subr.mxu0 0.0
      %502 = vmatpush1.msra.mxu0 0.0
      %503 = vmatprep.subr.mxu0 0.0
      %504 = vmatpush1.msra.mxu0 0.0
      %505 = vmatprep.subr.mxu0 0.0
      %506 = vmatpush1.msra.mxu0 0.0
      %507 = vmatprep.subr.mxu0 0.0
      %508 = vmatpush1.msra.mxu0 0.0
      %509 = vmatprep.subr.mxu0 0.0
      %510 = vmatpush1.msra.mxu0 0.0
      %511 = vmatprep.subr.mxu0 0.0
      %512 = vmatpush1.msra.mxu0 0.0
      %513 = vmatprep.subr.mxu0 0.0
      %514 = vmatpush1.msra.mxu0 0.0
      %515 = vmatprep.subr.mxu0 0.0
      %516 = vmatpush1.msra.mxu0 0.0
      %517 = vmatprep.subr.mxu0 0.0
      %518 = vmatpush1.msra.mxu0 0.0
      %519 = vmatprep.subr.mxu0 0.0
      %520 = vmatpush1.msra.mxu0 0.0
      %521 = vmatprep.subr.mxu0 0.0
      %522 = vmatpush1.msra.mxu0 0.0
      %523 = vmatprep.subr.mxu0 0.0
      %524 = vmatpush1.msra.mxu0 0.0
      %525 = vmatprep.subr.mxu0 0.0
      %526 = vmatpush1.msra.mxu0 0.0
      %527 = vmatprep.subr.mxu0 0.0
      %528 = vmatpush1.msra.mxu0 0.0
      %529 = vmatprep.subr.mxu0 0.0
      %530 = vmatpush1.msra.mxu0 0.0
      %531 = vmatprep.subr.mxu0 0.0
      %532 = vmatpush1.msra.mxu0 0.0
      %533 = vmatprep.subr.mxu0 0.0
      %534 = vmatpush1.msra.mxu0 0.0
      %535 = vmatprep.subr.mxu0 0.0
      %536 = vmatpush1.msra.mxu0 0.0
      %537 = vmatprep.subr.mxu0 0.0
      %538 = vmatpush1.msra.mxu0 0.0
      %539 = vmatprep.subr.mxu0 0.0
      %540 = vmatpush1.msra.mxu0 0.0
      %541 = vmatprep.subr.mxu0 0.0
      %542 = vmatpush1.msra.mxu0 0.0
      %543 = vmatprep.subr.mxu0 0.0
      %544 = vmatpush1.msra.mxu0 0.0
      %545 = vmatprep.mubr.f32.mxu0 0.0
      %546 = vmatmul.mubr.f32.gmra.mrb[0].mxu0 %v472
      %v547 = vpop.f32.mrb[0].mxu0
      %v548 = vadd.f32 0.0, %v547
      %v549 = vpop.f32.mrb[0].mxu0
      %v550 = vadd.f32 0.0, %v549
      %551 = vdwg.mxu0
      %v552 = vld [vmem:[%s3] sm:$0xff]
      %554 = vset.pattern.permute.xlu0 2
      %555 = vperm.xlu0 %554, %v552
      %v556 = vpop.permute.xlu0 %555
      %v558 = vmul.f32 %v548, %v556
      %v559 = vmul.f32 %v550, %v556
      %560 = vset.pattern.permute.xlu0 3
      %561 = vperm.xlu0 %560, %v552
      %v562 = vpop.permute.xlu0 %561
      %v564 = vadd.f32 %v558, %v562
      %v565 = vadd.f32 %v559, %v562
      %v566 = vmax.f32 %v564, 0.0
      %v567 = vmax.f32 %v565, 0.0
      %v568 = vsel %vm321, %v566, 0.0
      %v569 = vsel %vm322, %v567, 0.0
      %v570 = vsel %vm332, %v566, 0.0
      %v571 = vsel %vm333, %v567, 0.0
      %574 = vrot.lane.b32.xlu0 %v570, 17
      %v575 = vpop.permute.xlu0 %574
      %576 = vrot.lane.b32.xlu0 %v571, 17
      %v577 = vpop.permute.xlu0 %576
      %v578 = vsel %vm342, %v575, %v577
      %vm582 = vcmask 1047688
      %583 = vst.msk [vmem:[#allocation3 + $0x8] sm:$0xff] %vm582, %v575
      %584 = vst [vmem:[#allocation3 + $0x10] sm:$0xff] %v578
      %585 = vst.msk [vmem:[#allocation3 + $0x18] sm:$0xff] %vm342, %v577
      %588 = vrot.lane.b32.xlu0 %v566, 16
      %v589 = vpop.permute.xlu0 %588
      %590 = vrot.lane.b32.xlu0 %v567, 16
      %v591 = vpop.permute.xlu0 %590
      %v592 = vsel %vm357, %v589, %v591
      %vm596 = vcmask 1047680
      %597 = vst.msk [vmem:[#allocation3 + $0x28] sm:$0xff] %vm596, %v589
      %598 = vst [vmem:[#allocation3 + $0x30] sm:$0xff] %v592
      %599 = vst.msk [vmem:[#allocation3 + $0x38] sm:$0xff] %vm357, %v591
      %602 = vrot.lane.b32.xlu0 %v568, 15
      %v603 = vpop.permute.xlu0 %602
      %604 = vrot.lane.b32.xlu0 %v569, 15
      %v605 = vpop.permute.xlu0 %604
      %v606 = vsel %vm373, %v603, %v605
      %vm610 = vcmask 1047672
      %611 = vst.msk [vmem:[#allocation3 + $0x48] sm:$0xff] %vm610, %v603
      %612 = vst [vmem:[#allocation3 + $0x50] sm:$0xff] %v606
      %613 = vst.msk [vmem:[#allocation3 + $0x58] sm:$0xff] %vm373, %v605
      %614 = vrot.lane.b32.xlu0 %v570, 1
      %v615 = vpop.permute.xlu0 %614
      %616 = vrot.lane.b32.xlu0 %v571, 1
      %v617 = vpop.permute.xlu0 %616
      %v618 = vsel %vm389, %v615, %v617
      %vm622 = vcmask 1047560
      %623 = vst.msk [vmem:[#allocation3 + $0x68] sm:$0xff] %vm622, %v615
      %624 = vst [vmem:[#allocation3 + $0x70] sm:$0xff] %v618
      %625 = vst.msk [vmem:[#allocation3 + $0x78] sm:$0xff] %vm389, %v617
      %626 = vst [vmem:[#allocation3 + $0x88] sm:$0xff] %v566
      %627 = vst [vmem:[#allocation3 + $0x90] sm:$0xff] %v567
      %628 = vrot.lane.b32.xlu0 %v568, 127
      %v629 = vpop.permute.xlu0 %628
      %630 = vrot.lane.b32.xlu0 %v569, 127
      %v631 = vpop.permute.xlu0 %630
      %v632 = vsel %vm407, %v629, %v631
      %vm636 = vcmask 1048568
      %637 = vst.msk [vmem:[#allocation3 + $0xa0] sm:$0xff] %vm636, %v629
      %638 = vst [vmem:[#allocation3 + $0xa8] sm:$0xff] %v632
      %639 = vst.msk [vmem:[#allocation3 + $0xb0] sm:$0xff] %vm407, %v631
      %640 = vrot.lane.b32.xlu0 %v570, 113
      %v641 = vpop.permute.xlu0 %640
      %642 = vrot.lane.b32.xlu0 %v571, 113
      %v643 = vpop.permute.xlu0 %642
      %v644 = vsel %vm421, %v641, %v643
      %vm648 = vcmask 1048456
      %649 = vst.msk [vmem:[#allocation3 + $0xc0] sm:$0xff] %vm648, %v641
      %650 = vst [vmem:[#allocation3 + $0xc8] sm:$0xff] %v644
      %651 = vst.msk [vmem:[#allocation3 + $0xd0] sm:$0xff] %vm421, %v643
      %652 = vrot.lane.b32.xlu0 %v566, 112
      %v653 = vpop.permute.xlu0 %652
      %654 = vrot.lane.b32.xlu0 %v567, 112
      %v655 = vpop.permute.xlu0 %654
      %v656 = vsel %vm435, %v653, %v655
      %vm660 = vcmask 1048448
      %661 = vst.msk [vmem:[#allocation3 + $0xe0] sm:$0xff] %vm660, %v653
      %662 = vst [vmem:[#allocation3 + $0xe8] sm:$0xff] %v656
      %663 = vst.msk [vmem:[#allocation3 + $0xf0] sm:$0xff] %vm435, %v655
      %664 = vrot.lane.b32.xlu0 %v568, 111
      %v665 = vpop.permute.xlu0 %664
      %666 = vrot.lane.b32.xlu0 %v569, 111
      %v667 = vpop.permute.xlu0 %666
      %v668 = vsel %vm449, %v665, %v667
      %vm672 = vcmask 1048440
      %673 = vst.msk [vmem:[#allocation3 + $0x100] sm:$0xff] %vm672, %v665
      %674 = vst [vmem:[#allocation3 + $0x108] sm:$0xff] %v668
      %675 = vst.msk [vmem:[#allocation3 + $0x110] sm:$0xff] %vm449, %v667
      %v677 = vcombine.high %v289, %v289
      %679 = vst [vmem:[#allocation3 + $0x128] sm:$0xf] %v289
      %680 = vst [vmem:[#allocation3 + $0x130] sm:$0xf] %v677
      %v681 = vld [vmem:[%s2] sm:$0xff]
      %v682 = vld [vmem:[#allocation3 + $0x8] sm:$0xff]
      %v683 = vld [vmem:[#allocation3 + $0x10] sm:$0xff]
      %v684 = vld [vmem:[#allocation3 + $0x28] sm:$0xff]
      %v685 = vld [vmem:[#allocation3 + $0x30] sm:$0xff]
      %v686 = vld [vmem:[#allocation3 + $0x48] sm:$0xff]
      %v687 = vld [vmem:[#allocation3 + $0x50] sm:$0xff]
      %v688 = vld [vmem:[#allocation3 + $0x68] sm:$0xff]
      %v689 = vld [vmem:[#allocation3 + $0x70] sm:$0xff]
      %v690 = vld [vmem:[#allocation3 + $0x88] sm:$0xff]
      %v691 = vld [vmem:[#allocation3 + $0x90] sm:$0xff]
      %v692 = vld [vmem:[#allocation3 + $0xa8] sm:$0xff]
      %v693 = vld [vmem:[#allocation3 + $0xb0] sm:$0xff]
      %v694 = vld [vmem:[#allocation3 + $0xc8] sm:$0xff]
      %v695 = vld [vmem:[#allocation3 + $0xd0] sm:$0xff]
      %v696 = vld [vmem:[#allocation3 + $0xe8] sm:$0xff]
      %v697 = vld [vmem:[#allocation3 + $0xf0] sm:$0xff]
      %v698 = vld [vmem:[#allocation3 + $0x108] sm:$0xff]
      %v699 = vld [vmem:[#allocation3 + $0x110] sm:$0xff]
      %v700 = vld [vmem:[#allocation3 + $0x128] sm:$0xf]
      %v701 = vld [vmem:[#allocation3 + $0x130] sm:$0xf]
      %v702 = vld [vmem:[%s3] sm:$0xff]
      %704 = vset.pattern.permute.xlu0 4
      %705 = vperm.xlu0 %704, %v702
      %v706 = vpop.permute.xlu0 %705
      %vm708 = vcmask 621568
      %v710 = vsel %vm708, %v681, 0
      %v713 = vsel %vm474, %v700, 0
      %v716 = vsel %vm474, %v701, 0
      %718 = vmatprep.subr.mxu0 %v683
      %719 = vmatpush1.msra.mxu0 %v682
      %720 = vmatprep.subr.mxu0 %v685
      %721 = vmatpush1.msra.mxu0 %v684
      %722 = vmatprep.subr.mxu0 %v687
      %723 = vmatpush1.msra.mxu0 %v686
      %724 = vmatprep.subr.mxu0 %v689
      %725 = vmatpush1.msra.mxu0 %v688
      %726 = vmatprep.subr.mxu0 %v691
      %727 = vmatpush1.msra.mxu0 %v690
      %728 = vmatprep.subr.mxu0 %v693
      %729 = vmatpush1.msra.mxu0 %v692
      %730 = vmatprep.subr.mxu0 %v695
      %731 = vmatpush1.msra.mxu0 %v694
      %732 = vmatprep.subr.mxu0 %v697
      %733 = vmatpush1.msra.mxu0 %v696
      %734 = vmatprep.subr.mxu0 %v699
      %735 = vmatpush1.msra.mxu0 %v698
      %736 = vmatprep.subr.mxu0 %v716
      %737 = vmatpush1.msra.mxu0 %v713
      %738 = vmatprep.subr.mxu0 0.0
      %739 = vmatpush1.msra.mxu0 0.0
      %740 = vmatprep.subr.mxu0 0.0
      %741 = vmatpush1.msra.mxu0 0.0
      %742 = vmatprep.subr.mxu0 0.0
      %743 = vmatpush1.msra.mxu0 0.0
      %744 = vmatprep.subr.mxu0 0.0
      %745 = vmatpush1.msra.mxu0 0.0
      %746 = vmatprep.subr.mxu0 0.0
      %747 = vmatpush1.msra.mxu0 0.0
      %748 = vmatprep.subr.mxu0 0.0
      %749 = vmatpush1.msra.mxu0 0.0
      %750 = vmatprep.subr.mxu0 0.0
      %751 = vmatpush1.msra.mxu0 0.0
      %752 = vmatprep.subr.mxu0 0.0
      %753 = vmatpush1.msra.mxu0 0.0
      %754 = vmatprep.subr.mxu0 0.0
      %755 = vmatpush1.msra.mxu0 0.0
      %756 = vmatprep.subr.mxu0 0.0
      %757 = vmatpush1.msra.mxu0 0.0
      %758 = vmatprep.subr.mxu0 0.0
      %759 = vmatpush1.msra.mxu0 0.0
      %760 = vmatprep.subr.mxu0 0.0
      %761 = vmatpush1.msra.mxu0 0.0
      %762 = vmatprep.subr.mxu0 0.0
      %763 = vmatpush1.msra.mxu0 0.0
      %764 = vmatprep.subr.mxu0 0.0
      %765 = vmatpush1.msra.mxu0 0.0
      %766 = vmatprep.subr.mxu0 0.0
      %767 = vmatpush1.msra.mxu0 0.0
      %768 = vmatprep.subr.mxu0 0.0
      %769 = vmatpush1.msra.mxu0 0.0
      %770 = vmatprep.subr.mxu0 0.0
      %771 = vmatpush1.msra.mxu0 0.0
      %772 = vmatprep.subr.mxu0 0.0
      %773 = vmatpush1.msra.mxu0 0.0
      %774 = vmatprep.subr.mxu0 0.0
      %775 = vmatpush1.msra.mxu0 0.0
      %776 = vmatprep.subr.mxu0 0.0
      %777 = vmatpush1.msra.mxu0 0.0
      %778 = vmatprep.subr.mxu0 0.0
      %779 = vmatpush1.msra.mxu0 0.0
      %780 = vmatprep.subr.mxu0 0.0
      %781 = vmatpush1.msra.mxu0 0.0
      %782 = vmatprep.mubr.f32.mxu0 0.0
      %783 = vmatmul.mubr.f32.gmra.mrb[0].mxu0 %v710
      %v784 = vpop.f32.mrb[0].mxu0
      %v785 = vadd.f32 %v706, %v784
      %v786 = vpop.f32.mrb[0].mxu0
      %v787 = vadd.f32 %v706, %v786
      %788 = vdwg.mxu0
      %789 = vst [vmem:[%s197] sm:$0xff] %v785
      %790 = vst [vmem:[%s197 + $0x8] sm:$0xff] %v787
      %p791 = scmp.lt.s32.totalorder %s15, 1
      %s792 = scalar_select %p791, %s15, 1
      %s793 = smul.addr %s792, 2
      %s794 = smul.addr %s793, 8
      %s795 = scalar_lea.vmem %s4, %s794
      // Predicated region
      $region41: #{residual_block_forward.1} parent=35 // pred_check
        %p796 = pneg %p122
      $region42: #{residual_block_forward.1} parent=35 // pred_check_branch
        %798 = sbr.rel (%p796) target = $region44
      $region43: #{residual_block_forward.1} parent=35 // pred_region
        _
      $region44: #{residual_block_forward.1} parent=35 // pred_fallthru
        _
    $region36: #{residual_block_forward.1} parent=5 // pred_fallthru
      _
    %p799 = scmp.le.s32.totalorder 2, %s10
    // Predicated region
    $region45: #{residual_block_forward.1} parent=5 // pred_check
      %p800 = pneg %p799
    $region46: #{residual_block_forward.1} parent=5 // pred_check_branch
      %802 = sbr.rel (%p800) target = $region48
    $region47: #{residual_block_forward.1} parent=5 // pred_region
      %s803 = ssub.s32 %s10, 2
      // Predicated region
      $region49: #{residual_block_forward.1} parent=47 // pred_check
        %p804 = pneg %p128
      $region50: #{residual_block_forward.1} parent=47 // pred_check_branch
        %806 = sbr.rel (%p804) target = $region52
      $region51: #{residual_block_forward.1} parent=47 // pred_region
        %p807 = scmp.lt.s32.totalorder %s16, 1
        %s808 = scalar_select %p807, %s16, 1
        %s809 = smul.addr %s808, 2
        %s810 = smul.addr %s809, 8
        %s811 = scalar_lea.vmem %s4, %s810
      $region52: #{residual_block_forward.1} parent=47 // pred_fallthru
        _
    $region48: #{residual_block_forward.1} parent=5 // pred_fallthru
      _
  $region6: #{residual_block_forward.1} parent=0 // loop_footer
    %s14 = sadd.s32 1, %s10
  $region7: #{residual_block_forward.1} parent=0 // loop_footer_branch
    %9 = sbr.rel target = $region3
  $region8: #{residual_block_forward.1} parent=0 // loop_exit
    _

</llo_original>
